<compile_context>
chip_gen: v5e
topology: v5e:2x2
jax: 0.10.0
libtpu: 0.0.40
codegen_flags: <defaults>
</compile_context>

<pallas_src>
import functools

import jax
import jax.numpy as jnp
from jax.experimental import pallas as pl
from jax.experimental.pallas import tpu as pltpu


# Conservative VMEM plan: double-buffered working set <= ~36 MiB, scoped limit
# raised to 48 MiB (fits all of v5e / v6e / v7x).
_VMEM_BUDGET_BYTES = 36 * 1024 * 1024
_VMEM_LIMIT_BYTES = 48 * 1024 * 1024


def _round_up(n, m):
    return ((n + m - 1) // m) * m


def _cdiv(a, b):
    return -(-a // b)


def _select_tiles(G, M, K, N, in_bytes, out_bytes, budget=_VMEM_BUDGET_BYTES):
    """Pick (tm, tn, tk).  The full group dim G lives inside every block."""
    tm = min(_round_up(M, 8), 512)
    tn = min(_round_up(N, 128), 2048)
    tk = min(_round_up(K, 128), 8192)

    def usage(tm_, tn_, tk_):
        # double-buffered x & w blocks + double-buffered out block
        # + f32 accumulator scratch + double-buffered bias block
        return (2 * G * (tm_ * tk_ + tn_ * tk_) * in_bytes
                + 2 * G * tm_ * tn_ * out_bytes
                + G * tm_ * tn_ * 4
                + 2 * G * tn_ * 4)

    while usage(tm, tn, tk) > budget and tk > 128:
        tk = _round_up(tk // 2, 128)
    while usage(tm, tn, tk) > budget and tm > 8:
        tm = _round_up(tm // 2, 8)
    while usage(tm, tn, tk) > budget and tn > 128:
        tn = _round_up(tn // 2, 128)

    # v7x megacore: keep >= 2 blocks on a parallel grid axis when possible so
    # the grid shards across both TensorCores (no effect on single-TC v5e/v6e).
    if _cdiv(M, tm) == 1 and _cdiv(N, tn) == 1 and M > 8:
        tm = _round_up(_cdiv(M, 2), 8)
    return tm, tn, tk


def _heads_mm_bias_kernel(x_ref, w_ref, b_ref, o_ref, acc_ref):
    """out[g] = x[g] @ w[g].T + b[g]; accumulates over the last grid axis (k)."""
    k = pl.program_id(2)

    @pl.when(k == 0)
    def _():
        # Initialize the accumulator with the broadcast bias: removes a VPU
        # add + bias fetch from the store epilogue of every output tile.
        acc_ref[...] = jnp.broadcast_to(
            b_ref[...].astype(jnp.float32)[:, None, :], acc_ref.shape)

    # (G, tm, tk) x (G, tn, tk), contracting the last dims -> (G, tm, tn).
    acc_ref[...] += jax.lax.dot_general(
        x_ref[...], w_ref[...],
        dimension_numbers=(((2,), (2,)), ((0,), (0,))),
        preferred_element_type=jnp.float32)

    @pl.when(k == pl.num_programs(2) - 1)
    def _():
        o_ref[...] = acc_ref[...].astype(o_ref.dtype)


def _heads_linear(xg, wg, bg, out_dtype):
    """xg: (G, M, K), wg: (G, N, K), bg: (G, N) f32 -> (G, M, N) in out_dtype."""
    G, M, K = xg.shape
    N = wg.shape[1]
    in_bytes = jnp.dtype(xg.dtype).itemsize
    out_bytes = jnp.dtype(out_dtype).itemsize
    tm, tn, tk = _select_tiles(G, M, K, N, in_bytes, out_bytes)

    Mp, Np, Kp = _round_up(M, tm), _round_up(N, tn), _round_up(K, tk)
    # Zero-pad only where needed (K zeros are exact for the reduction; padded
    # M rows / N cols are sliced off).  The pads are conditional so the common
    # aligned case streams x straight from HBM with no extra copy.
    if (Mp, Kp) != (M, K):
        xg = jnp.pad(xg, ((0, 0), (0, Mp - M), (0, Kp - K)))
    if (Np, Kp) != (N, K):
        wg = jnp.pad(wg, ((0, 0), (0, Np - N), (0, Kp - K)))
    if Np != N:
        bg = jnp.pad(bg, ((0, 0), (0, Np - N)))

    out = pl.pallas_call(
        _heads_mm_bias_kernel,
        out_shape=jax.ShapeDtypeStruct((G, Mp, Np), out_dtype),
        grid=(Mp // tm, Np // tn, Kp // tk),
        in_specs=[
            pl.BlockSpec((G, tm, tk), lambda i, j, k: (0, i, k)),
            pl.BlockSpec((G, tn, tk), lambda i, j, k: (0, j, k)),
            pl.BlockSpec((G, tn), lambda i, j, k: (0, j)),
        ],
        out_specs=pl.BlockSpec((G, tm, tn), lambda i, j, k: (0, i, j)),
        scratch_shapes=[pltpu.VMEM((G, tm, tn), jnp.float32)],
        compiler_params=pltpu.CompilerParams(
            dimension_semantics=("parallel", "parallel", "arbitrary"),
            vmem_limit_bytes=_VMEM_LIMIT_BYTES,
        ),
    )(xg, wg, bg)

    if (Mp, Np) != (M, N):
        out = out[:, :M, :N]
    return out


@functools.partial(jax.jit, static_argnames=("individual", "compute_dtype"))
def flatten_head_forward(x, weight, bias, *, individual=False,
                         compute_dtype=jnp.bfloat16):
    """Pallas equivalent of Flatten_Head.forward (dropout == identity).

    x: (B, n_vars, d_model, patch_num)
    individual=False: weight (target_window, nf), bias (target_window,)
    individual=True : weight (n_vars, target_window, nf), bias (n_vars, target_window)
    returns (B, n_vars, target_window) in x.dtype
    """
    B, n_vars, d_model, patch_num = x.shape
    nf = d_model * patch_num
    out_dtype = x.dtype

    if individual:
        target_window = weight.shape[1]
        # flatten(start_dim=-2) is a free reshape; the transpose to put the
        # per-var group axis first fuses with the compute-dtype cast (single
        # HBM pass, which the cast needs anyway).
        xg = jnp.transpose(x.reshape(B, n_vars, nf), (1, 0, 2)).astype(compute_dtype)
        wg = weight.astype(compute_dtype)            # (V, tw, nf) -- no transpose
        bg = bias.astype(jnp.float32)                # (V, tw)
        out = _heads_linear(xg, wg, bg, out_dtype)   # (V, B, tw)
        return jnp.transpose(out, (1, 0, 2))         # (B, V, tw)
    else:
        target_window = weight.shape[0]
        xg = x.reshape(B * n_vars, nf).astype(compute_dtype)[None]  # (1, M, nf)
        wg = weight.astype(compute_dtype)[None]                     # (1, tw, nf)
        bg = bias.astype(jnp.float32)[None]                         # (1, tw)
        out = _heads_linear(xg, wg, bg, out_dtype)                  # (1, M, tw)
        return out[0].reshape(B, n_vars, target_window)


if __name__ == "__main__":
    key = jax.random.PRNGKey(0)
    B, n_vars, d_model, patch_num, target_window = 2, 4, 16, 8, 32
    nf = d_model * patch_num

    k1, k2, k3, k4, k5 = jax.random.split(key, 5)
    x = jax.random.normal(k1, (B, n_vars, d_model, patch_num), dtype=jnp.float32)

    # ---- shared head (individual=False) ----
    w = 0.02 * jax.random.normal(k2, (target_window, nf), dtype=jnp.float32)
    b = jax.random.normal(k3, (target_window,), dtype=jnp.float32)
    ref_shared = x.reshape(B, n_vars, nf) @ w.T + b

    y_f32 = jax.block_until_ready(
        flatten_head_forward(x, w, b, individual=False, compute_dtype=jnp.float32))
    assert y_f32.shape == (B, n_vars, target_window), y_f32.shape
    assert jnp.allclose(y_f32, ref_shared, atol=1e-2, rtol=1e-2), (
        "shared-head (f32 compute) mismatch vs reference")

    y_bf16 = jax.block_until_ready(flatten_head_forward(x, w, b, individual=False))
    assert y_bf16.shape == (B, n_vars, target_window), y_bf16.shape
    assert jnp.allclose(y_bf16, ref_shared, atol=5e-2, rtol=5e-2), (
        "shared-head (bf16 compute) mismatch vs reference")

    # ---- per-variable heads (individual=True) ----
    w_i = 0.02 * jax.random.normal(
        k4, (n_vars, target_window, nf), dtype=jnp.float32)
    b_i = jax.random.normal(k5, (n_vars, target_window), dtype=jnp.float32)
    ref_ind = (
        jnp.einsum("bvk,vnk->bvn", x.reshape(B, n_vars, nf), w_i) + b_i[None]
    )

    yi_f32 = jax.block_until_ready(
        flatten_head_forward(x, w_i, b_i, individual=True, compute_dtype=jnp.float32))
    assert yi_f32.shape == (B, n_vars, target_window), yi_f32.shape
    assert jnp.allclose(yi_f32, ref_ind, atol=1e-2, rtol=1e-2), (
        "individual-head (f32 compute) mismatch vs reference")

    yi_bf16 = jax.block_until_ready(
        flatten_head_forward(x, w_i, b_i, individual=True))
    assert yi_bf16.shape == (B, n_vars, target_window), yi_bf16.shape
    assert jnp.allclose(yi_bf16, ref_ind, atol=5e-2, rtol=5e-2), (
        "individual-head (bf16 compute) mismatch vs reference")

    print("KERNEL_OK")
</pallas_src>

<mosaic_0001>
module attributes {stable_mosaic.version = 11 : i64} {
  func.func @_heads_mm_bias_kernel(%arg0: i32, %arg1: i32, %arg2: i32, %arg3: memref<1x8x128xf32, #tpu.memory_space<vmem>>, %arg4: memref<1x128x128xf32, #tpu.memory_space<vmem>>, %arg5: memref<1x128xf32, #tpu.memory_space<vmem>>, %arg6: memref<1x8x128xf32, #tpu.memory_space<vmem>>, %arg7: memref<1x8x128xf32, #tpu.memory_space<vmem>>) attributes {dimension_semantics = [#tpu.dimension_semantics<parallel>, #tpu.dimension_semantics<parallel>, #tpu.dimension_semantics<arbitrary>], iteration_bounds = array<i64: 1, 1, 1>, scalar_prefetch = 0 : i64, scratch_operands = 1 : i64, tpu.core_type = #tpu.core_type<tc>, window_params = [{transform_indices = @transform_0, window_bounds = array<i64: 1, 8, 128>}, {transform_indices = @transform_1, window_bounds = array<i64: 1, 128, 128>}, {transform_indices = @transform_2, window_bounds = array<i64: 1, 128>}, {transform_indices = @transform_3, window_bounds = array<i64: 1, 8, 128>}]} {
    %c0_i32 = arith.constant 0 : i32
    %0 = arith.cmpi eq, %arg2, %c0_i32 : i32
    %1 = arith.extui %0 : i1 to i32
    %c0_i32_0 = arith.constant 0 : i32
    %2 = arith.cmpi ne, %1, %c0_i32_0 : i32
    scf.if %2 {
      %c0_14 = arith.constant 0 : index
      %c0_15 = arith.constant 0 : index
      %12 = vector.load %arg5[%c0_14, %c0_15] : memref<1x128xf32, #tpu.memory_space<vmem>>, vector<1x128xf32>
      %13 = vector.shape_cast %12 : vector<1x128xf32> to vector<1x1x128xf32>
      %14 = vector.shape_cast %13 : vector<1x1x128xf32> to vector<1x1x128xf32>
      %15 = vector.broadcast %14 : vector<1x1x128xf32> to vector<1x8x128xf32>
      %c0_16 = arith.constant 0 : index
      %c0_17 = arith.constant 0 : index
      %c0_18 = arith.constant 0 : index
      %16 = vector.load %arg7[%c0_16, %c0_17, %c0_18] : memref<1x8x128xf32, #tpu.memory_space<vmem>>, vector<1x8x128xf32>
      tpu.vector_store %arg7[%c0_16, %c0_17, %c0_18], %15 {strides = array<i32>} : memref<1x8x128xf32, #tpu.memory_space<vmem>>, vector<1x8x128xf32>,
    } else {
    }
    %c0 = arith.constant 0 : index
    %c0_1 = arith.constant 0 : index
    %c0_2 = arith.constant 0 : index
    %3 = vector.load %arg7[%c0, %c0_1, %c0_2] : memref<1x8x128xf32, #tpu.memory_space<vmem>>, vector<1x8x128xf32>
    %c0_3 = arith.constant 0 : index
    %c0_4 = arith.constant 0 : index
    %c0_5 = arith.constant 0 : index
    %4 = vector.load %arg3[%c0_3, %c0_4, %c0_5] : memref<1x8x128xf32, #tpu.memory_space<vmem>>, vector<1x8x128xf32>
    %c0_6 = arith.constant 0 : index
    %c0_7 = arith.constant 0 : index
    %c0_8 = arith.constant 0 : index
    %5 = vector.load %arg4[%c0_6, %c0_7, %c0_8] : memref<1x128x128xf32, #tpu.memory_space<vmem>>, vector<1x128x128xf32>
    %cst = arith.constant dense<0.000000e+00> : vector<1x8x128xf32>
    %6 = tpu.matmul %4, %5, %cst {dimension_numbers = #tpu.dot_dimension_numbers<[2], [2], [1], [1], [0, 0, 0, 1, 1, 1], [0], [0]>} : vector<1x8x128xf32>, vector<1x128x128xf32>, vector<1x8x128xf32> -> vector<1x8x128xf32>
    %7 = arith.addf %3, %6 : vector<1x8x128xf32>
    %c0_9 = arith.constant 0 : index
    %c0_10 = arith.constant 0 : index
    %c0_11 = arith.constant 0 : index
    %8 = vector.load %arg7[%c0_9, %c0_10, %c0_11] : memref<1x8x128xf32, #tpu.memory_space<vmem>>, vector<1x8x128xf32>
    tpu.vector_store %arg7[%c0_9, %c0_10, %c0_11], %7 {strides = array<i32>} : memref<1x8x128xf32, #tpu.memory_space<vmem>>, vector<1x8x128xf32>,
    %c0_i32_12 = arith.constant 0 : i32
    %9 = arith.cmpi eq, %arg2, %c0_i32_12 : i32
    %10 = arith.extui %9 : i1 to i32
    %c0_i32_13 = arith.constant 0 : i32
    %11 = arith.cmpi ne, %10, %c0_i32_13 : i32
    scf.if %11 {
      %c0_14 = arith.constant 0 : index
      %c0_15 = arith.constant 0 : index
      %c0_16 = arith.constant 0 : index
      %12 = vector.load %arg7[%c0_14, %c0_15, %c0_16] : memref<1x8x128xf32, #tpu.memory_space<vmem>>, vector<1x8x128xf32>
      %c0_17 = arith.constant 0 : index
      %c0_18 = arith.constant 0 : index
      %c0_19 = arith.constant 0 : index
      %13 = vector.load %arg6[%c0_17, %c0_18, %c0_19] : memref<1x8x128xf32, #tpu.memory_space<vmem>>, vector<1x8x128xf32>
      tpu.vector_store %arg6[%c0_17, %c0_18, %c0_19], %12 {strides = array<i32>} : memref<1x8x128xf32, #tpu.memory_space<vmem>>, vector<1x8x128xf32>,
    } else {
    }
    return
  }
  func.func @transform_0(%arg0: i32, %arg1: i32, %arg2: i32) -> (i32, i32, i32) {
    %c0_i32 = arith.constant 0 : i32
    %c0_i32_0 = arith.constant 0 : i32
    return %c0_i32, %arg0, %arg2 : i32, i32, i32
  }
  func.func @transform_1(%arg0: i32, %arg1: i32, %arg2: i32) -> (i32, i32, i32) {
    %c0_i32 = arith.constant 0 : i32
    %c0_i32_0 = arith.constant 0 : i32
    return %c0_i32, %arg1, %arg2 : i32, i32, i32
  }
  func.func @transform_2(%arg0: i32, %arg1: i32, %arg2: i32) -> (i32, i32) {
    %c0_i32 = arith.constant 0 : i32
    %c0_i32_0 = arith.constant 0 : i32
    return %c0_i32, %arg1 : i32, i32
  }
  func.func @transform_3(%arg0: i32, %arg1: i32, %arg2: i32) -> (i32, i32, i32) {
    %c0_i32 = arith.constant 0 : i32
    %c0_i32_0 = arith.constant 0 : i32
    return %c0_i32, %arg0, %arg1 : i32, i32, i32
  }
}

</mosaic_0001>

<llo_original>
// kernel: flatten_head_forward.1
$region0: #{flatten_head_forward.1}
  #allocation0 [shape = 'u32[]', space=smem, size = 0x4, offset = 0x4, fixed_abs, tag = 'smem constant byte address 0x4 - core index']
  #allocation1 [shape = 'u32[72,128]{1,0:T(1,128)}', space=vmem, size = 0x9000, scoped, tag = 'internal scratch']
  #allocation2 [shape = 'f32[1,8,128]{2,1,0:T(8,128)}', space=vmem, size = 0x1000, scoped, tag = 'scratch operand']
  %s0 = inlined_call_operand.vmem [shape: f32[1,8,128], index: 0, kind: input, shape index: {}]
  %s1 = inlined_call_operand.vmem [shape: f32[1,128,128], index: 1, kind: input, shape index: {}]
  %s2 = inlined_call_operand.vmem [shape: f32[1,128], index: 2, kind: input, shape index: {}]
  %s3 = inlined_call_operand.hbm [shape: f32[1,8,128], index: 3, kind: output, shape index: {}]
  %s4 = sld [smem:[#allocation0]]
  $region30: #{flatten_head_forward.1} parent=0
    _
  %s6 = ssub.s32 1, %s4
  %s7 = scalar_select 0, %s6, %s4
  $region1: #{flatten_head_forward.1} parent=0
    #allocation3 [shape = 'u8[4096]{0}', space=vmem, size = 0x1000, scoped, tag = 'output window, operand 0, single buffered']
    #allocation4 [shape = 's32[1]{0}', space=sflag, size = 0x4, scoped, tag = 'scoped memory for flatten_head_forward.1']
    %8 = vsyncpa [#allocation4], 0
    // Predicated region
    $region2: #{flatten_head_forward.1} parent=1 // pred_check
      _
    $region3: #{flatten_head_forward.1} parent=1 // pred_check_branch
      %10 = sbr.rel (0) target = $region5
    $region4: #{flatten_head_forward.1} parent=1 // pred_region
      _
    $region5: #{flatten_head_forward.1} parent=1 // pred_fallthru
      _
    // Predicated region
    $region6: #{flatten_head_forward.1} parent=1 // pred_check
      _
    $region7: #{flatten_head_forward.1} parent=1 // pred_check_branch
      %12 = sbr.rel (0) target = $region9
    $region8: #{flatten_head_forward.1} parent=1 // pred_region
      _
    $region9: #{flatten_head_forward.1} parent=1 // pred_fallthru
      _
    // Predicated region
    $region10: #{flatten_head_forward.1} parent=1 // pred_check
      _
    $region11: #{flatten_head_forward.1} parent=1 // pred_check_branch
      %14 = sbr.rel (0) target = $region13
    $region12: #{flatten_head_forward.1} parent=1 // pred_region
      _
    $region13: #{flatten_head_forward.1} parent=1 // pred_fallthru
      _
    %p15 = scmp.eq.s32.totalorder 0, 0
    // Predicated region
    $region14: #{flatten_head_forward.1} parent=1 // pred_check
      %p16 = pneg %p15
    $region15: #{flatten_head_forward.1} parent=1 // pred_check_branch
      %18 = sbr.rel (%p16) target = $region17
    $region16: #{flatten_head_forward.1} parent=1 // pred_region
      %v19 = vld [vmem:[%s2] sm:$0x1]
      %v21 = vperm.slane %v19, 0
      %23 = vst [vmem:[#allocation2] sm:$0xff] %v21
    $region17: #{flatten_head_forward.1} parent=1 // pred_fallthru
      _
    %v24 = vld [vmem:[#allocation2] sm:$0xff]
    %v25 = vld [vmem:[%s0] sm:$0xff]
    %v26 = vld [vmem:[%s1] sm:$0xff]
    %v27 = vld [vmem:[%s1 + $0x8] sm:$0xff]
    %v28 = vld [vmem:[%s1 + $0x10] sm:$0xff]
    %v29 = vld [vmem:[%s1 + $0x18] sm:$0xff]
    %v30 = vld [vmem:[%s1 + $0x20] sm:$0xff]
    %v31 = vld [vmem:[%s1 + $0x28] sm:$0xff]
    %v32 = vld [vmem:[%s1 + $0x30] sm:$0xff]
    %v33 = vld [vmem:[%s1 + $0x38] sm:$0xff]
    %v34 = vld [vmem:[%s1 + $0x40] sm:$0xff]
    %v35 = vld [vmem:[%s1 + $0x48] sm:$0xff]
    %v36 = vld [vmem:[%s1 + $0x50] sm:$0xff]
    %v37 = vld [vmem:[%s1 + $0x58] sm:$0xff]
    %v38 = vld [vmem:[%s1 + $0x60] sm:$0xff]
    %v39 = vld [vmem:[%s1 + $0x68] sm:$0xff]
    %v40 = vld [vmem:[%s1 + $0x70] sm:$0xff]
    %v41 = vld [vmem:[%s1 + $0x78] sm:$0xff]
    %42 = vmatpush.xpose.msra.mxu0 %v41
    %43 = vmatpush.xpose.msra.mxu0 %v40
    %44 = vmatpush.xpose.msra.mxu0 %v39
    %45 = vmatpush.xpose.msra.mxu0 %v38
    %46 = vmatpush.xpose.msra.mxu0 %v37
    %47 = vmatpush.xpose.msra.mxu0 %v36
    %48 = vmatpush.xpose.msra.mxu0 %v35
    %49 = vmatpush.xpose.msra.mxu0 %v34
    %50 = vmatpush.xpose.msra.mxu0 %v33
    %51 = vmatpush.xpose.msra.mxu0 %v32
    %52 = vmatpush.xpose.msra.mxu0 %v31
    %53 = vmatpush.xpose.msra.mxu0 %v30
    %54 = vmatpush.xpose.msra.mxu0 %v29
    %55 = vmatpush.xpose.msra.mxu0 %v28
    %56 = vmatpush.xpose.msra.mxu0 %v27
    %57 = vmatpush.xpose.msra.mxu0 %v26
    %58 = vmatmul.f32.gmra.mxu0 %v25
    %v59 = vpop.f32.mrf.mxu0
    %v60 = vadd.f32 0.0, %v59
    %61 = vdwg.mxu0
    %v62 = vadd.f32 %v24, %v60
    %63 = vst [vmem:[#allocation2] sm:$0xff] %v62
    // Predicated region
    $region18: #{flatten_head_forward.1} parent=1 // pred_check
      %p64 = pneg %p15
    $region19: #{flatten_head_forward.1} parent=1 // pred_check_branch
      %66 = sbr.rel (%p64) target = $region21
    $region20: #{flatten_head_forward.1} parent=1 // pred_region
      %v67 = vld [vmem:[#allocation2] sm:$0xff]
      %68 = vst [vmem:[#allocation3] sm:$0xff] %v67
    $region21: #{flatten_head_forward.1} parent=1 // pred_fallthru
      _
    // Predicated region
    $region22: #{flatten_head_forward.1} parent=1 // pred_check
      _
    $region23: #{flatten_head_forward.1} parent=1 // pred_check_branch
      %70 = sbr.rel (0) target = $region25
    $region24: #{flatten_head_forward.1} parent=1 // pred_region
      %72 = vsyncadd [#allocation4], 0
      %s74 = sshll.u32 [#allocation3], 4
      %s75 = int_to_ptr.vmem [resolvable:$true] %s74
      %s76 = sshll.u32 %s3, 4
      %s77 = int_to_ptr.hbm [resolvable:$true] %s76
      %79 = dma.vmem_to_hbm [thread:$0]  %s75, 128, %s77, [#allocation4]
    $region25: #{flatten_head_forward.1} parent=1 // pred_fallthru
      _
    // Predicated region
    $region26: #{flatten_head_forward.1} parent=1 // pred_check
      _
    $region27: #{flatten_head_forward.1} parent=1 // pred_check_branch
      %81 = sbr.rel (0) target = $region29
    $region28: #{flatten_head_forward.1} parent=1 // pred_region
      %83 = dma.done [#allocation4], 128
    $region29: #{flatten_head_forward.1} parent=1 // pred_fallthru
      _
    %84 = vsyncpa [#allocation4], 1

</llo_original>
